<compile_context>
chip_gen: v5e
topology: v5e:2x2
jax: 0.10.0
libtpu: 0.0.40
codegen_flags: <defaults>
</compile_context>

<pallas_src>
import jax
import jax.numpy as jnp
import numpy as np
from jax.experimental import pallas as pl
from jax.experimental.pallas import tpu as pltpu


def _up_sample_kernel(x_ref, w_ref, shift_ref, o_ref):
    # x_ref:     (H, W, C)     one image (batch dim squeezed by BlockSpec)
    # w_ref:     (C, C)        BN-folded 1x1 conv weight, laid out for x @ w
    # shift_ref: (1, C)        BN-folded bias
    # o_ref:     (2H, 2W, C)
    H, W, C = x_ref.shape

    # ---- 1x1 conv + folded BN on the small HxW image (MXU) ----------------
    y = jnp.dot(x_ref[...].reshape(H * W, C), w_ref[...],
                preferred_element_type=jnp.float32)
    y = (y + shift_ref[...]).reshape(H, W, C)

    # ---- bilinear x2 along W (half-pixel centers, edge clamped) -----------
    #   out[:, 2j]   = 0.75*y[:, j] + 0.25*y[:, max(j-1, 0)]
    #   out[:, 2j+1] = 0.75*y[:, j] + 0.25*y[:, min(j+1, W-1)]
    w_prev = jnp.concatenate([y[:, :1], y[:, :W - 1]], axis=1)
    w_next = jnp.concatenate([y[:, 1:], y[:, W - 1:]], axis=1)
    even_w = 0.75 * y + 0.25 * w_prev
    odd_w = 0.75 * y + 0.25 * w_next
    # interleave columns (done while the tensor still has only H rows)
    yw = jnp.stack([even_w, odd_w], axis=2).reshape(H, 2 * W, C)

    # ---- bilinear x2 along H (leading axis: tile-granular shifts) ---------
    h_prev = jnp.concatenate([yw[:1], yw[:H - 1]], axis=0)
    h_next = jnp.concatenate([yw[1:], yw[H - 1:]], axis=0)
    even_h = jnp.maximum(0.75 * yw + 0.25 * h_prev, 0.0)   # fused ReLU
    odd_h = jnp.maximum(0.75 * yw + 0.25 * h_next, 0.0)    # fused ReLU

    # interleave rows and store
    out = jnp.stack([even_h, odd_h], axis=1).reshape(2 * H, 2 * W, C)
    o_ref[...] = out.astype(o_ref.dtype)


def up_sample_forward(x_nhwc, conv_w, conv_b, bn_gamma, bn_beta, bn_mean, bn_var,
                      eps=1e-5):
    """x_nhwc: (N, H, W, C) float32.  conv_w: (C_out, C_in) from the 1x1 Conv2d."""
    N, H, W, C = x_nhwc.shape

    # Fold BN (eval) into the conv:  y = x @ w' + shift'
    scale = bn_gamma / jnp.sqrt(bn_var + eps)              # (C,)
    w_folded = conv_w.T * scale[None, :]                   # (C_in, C_out)
    shift_folded = ((conv_b - bn_mean) * scale + bn_beta).reshape(1, C)

    flops = int(N * (2 * H * W * C * C + 28 * H * W * C))
    bytes_accessed = int(4 * (N * H * W * C + C * C + C + N * 4 * H * W * C))

    out_shape = jax.ShapeDtypeStruct((N, 2 * H, 2 * W, C), x_nhwc.dtype)

    return pl.pallas_call(
        _up_sample_kernel,
        out_shape=out_shape,
        grid_spec=pltpu.PrefetchScalarGridSpec(
            num_scalar_prefetch=0,
            grid=(N,),
            in_specs=[
                pl.BlockSpec((None, H, W, C), lambda n: (n, 0, 0, 0)),
                pl.BlockSpec((C, C), lambda n: (0, 0)),
                pl.BlockSpec((1, C), lambda n: (0, 0)),
            ],
            out_specs=pl.BlockSpec((None, 2 * H, 2 * W, C),
                                   lambda n: (n, 0, 0, 0)),
        ),
        compiler_params=pltpu.CompilerParams(
            dimension_semantics=("parallel",)),
        cost_estimate=pl.CostEstimate(flops=flops, transcendentals=0,
                                      bytes_accessed=bytes_accessed),
    )(x_nhwc, w_folded, shift_folded)


# ----------------------------- reference ----------------------------------
def _x2_source_index(size):
    """PyTorch F.interpolate(align_corners=False) source indices for scale 2."""
    j = np.arange(2 * size, dtype=np.float64)
    src = np.maximum(j * 0.5 - 0.25, 0.0)
    i0 = np.minimum(np.floor(src).astype(np.int32), size - 1)
    i1 = np.minimum(i0 + 1, size - 1)
    lam = (src - i0).astype(np.float32)
    return i0, i1, lam


def _bilinear_x2_nhwc(x):
    """Independent bilinear x2 upsample (gather-based, half-pixel centers)."""
    i0, i1, lh = _x2_source_index(x.shape[1])
    lh = jnp.asarray(lh)[None, :, None, None]
    x = x[:, i0] * (1.0 - lh) + x[:, i1] * lh
    j0, j1, lw = _x2_source_index(x.shape[2])
    lw = jnp.asarray(lw)[None, None, :, None]
    x = x[:, :, j0] * (1.0 - lw) + x[:, :, j1] * lw
    return x


def _reference(x_nhwc, conv_w, conv_b, gamma, beta, mean, var, eps=1e-5):
    """Plain-JAX reference in the ORIGINAL op order: upsample -> conv -> BN -> ReLU."""
    x = _bilinear_x2_nhwc(x_nhwc)
    y = jnp.einsum("nhwc,oc->nhwo", x, conv_w,
                   precision=jax.lax.Precision.HIGHEST) + conv_b
    y = (y - mean) / jnp.sqrt(var + eps) * gamma + beta
    return jnp.maximum(y, 0.0)


if __name__ == "__main__":
    # shapes consistent with the module (default channels=96)
    N, C, H, W = 2, 96, 8, 8

    key = jax.random.PRNGKey(0)
    kx, kw, kb, kg, kbe, km, kv = jax.random.split(key, 7)

    # PyTorch-style NCHW input, transposed to the kernel's NHWC layout
    x_nchw = jax.random.normal(kx, (N, C, H, W), dtype=jnp.float32)
    x_nhwc = jnp.transpose(x_nchw, (0, 2, 3, 1))

    # Conv2d 1x1: weight (C, C, 1, 1) -> (C, C)
    conv_w = jax.random.normal(kw, (C, C), dtype=jnp.float32) * 0.05
    conv_b = jax.random.normal(kb, (C,), dtype=jnp.float32) * 0.05

    # BatchNorm2d params / running stats (eval-mode affine form)
    bn_gamma = 1.0 + 0.1 * jax.random.normal(kg, (C,), dtype=jnp.float32)
    bn_beta = 0.1 * jax.random.normal(kbe, (C,), dtype=jnp.float32)
    bn_mean = 0.1 * jax.random.normal(km, (C,), dtype=jnp.float32)
    bn_var = jnp.abs(1.0 + 0.1 * jax.random.normal(kv, (C,), dtype=jnp.float32))

    out = up_sample_forward(x_nhwc, conv_w, conv_b,
                            bn_gamma, bn_beta, bn_mean, bn_var)
    out = jax.block_until_ready(out)

    ref = _reference(x_nhwc, conv_w, conv_b, bn_gamma, bn_beta, bn_mean, bn_var)
    # Tolerance covers the (mathematically exact) conv-before-upsample reorder
    # plus any MXU input-rounding differences in the f32 matmul paths.
    np.testing.assert_allclose(np.asarray(out), np.asarray(ref),
                               rtol=2e-3, atol=2e-3)

    # back to PyTorch's NCHW convention
    out_nchw = jnp.transpose(out, (0, 3, 1, 2))
    assert out_nchw.shape == (N, C, 2 * H, 2 * W)

    print("KERNEL_OK")
</pallas_src>

<mosaic_0001>
module attributes {stable_mosaic.version = 11 : i64} {
  func.func @_up_sample_kernel(%arg0: i32, %arg1: memref<1x8x8x96xf32, #tpu.memory_space<vmem>>, %arg2: memref<96x96xf32, #tpu.memory_space<vmem>>, %arg3: memref<1x96xf32, #tpu.memory_space<vmem>>, %arg4: memref<1x16x16x96xf32, #tpu.memory_space<vmem>>) attributes {dimension_semantics = [#tpu.dimension_semantics<parallel>], iteration_bounds = array<i64: 2>, scalar_prefetch = 0 : i64, scratch_operands = 0 : i64, tpu.core_type = #tpu.core_type<tc>, window_params = [{transform_indices = @transform_0, window_bounds = array<i64: 1, 8, 8, 96>}, {pipeline_mode = #tpu.pipeline_mode<synchronous>, transform_indices = @transform_1, window_bounds = array<i64: 96, 96>}, {pipeline_mode = #tpu.pipeline_mode<synchronous>, transform_indices = @transform_2, window_bounds = array<i64: 1, 96>}, {transform_indices = @transform_3, window_bounds = array<i64: 1, 16, 16, 96>}]} {
    %c0 = arith.constant 0 : index
    %c0_0 = arith.constant 0 : index
    %c0_1 = arith.constant 0 : index
    %c0_2 = arith.constant 0 : index
    %0 = vector.load %arg1[%c0, %c0_0, %c0_1, %c0_2] : memref<1x8x8x96xf32, #tpu.memory_space<vmem>>, vector<1x8x8x96xf32>
    %1 = vector.shape_cast %0 : vector<1x8x8x96xf32> to vector<8x8x96xf32>
    %2 = vector.shape_cast %1 : vector<8x8x96xf32> to vector<64x96xf32>
    %c0_3 = arith.constant 0 : index
    %c0_4 = arith.constant 0 : index
    %3 = vector.load %arg2[%c0_3, %c0_4] : memref<96x96xf32, #tpu.memory_space<vmem>>, vector<96x96xf32>
    %cst = arith.constant dense<0.000000e+00> : vector<64x96xf32>
    %4 = tpu.matmul %2, %3, %cst {dimension_numbers = #tpu.dot_dimension_numbers<[1], [0], [0], [1], [0, 0, 1, 1], [], []>} : vector<64x96xf32>, vector<96x96xf32>, vector<64x96xf32> -> vector<64x96xf32>
    %c0_5 = arith.constant 0 : index
    %c0_6 = arith.constant 0 : index
    %5 = vector.load %arg3[%c0_5, %c0_6] : memref<1x96xf32, #tpu.memory_space<vmem>>, vector<1x96xf32>
    %6 = vector.broadcast %5 : vector<1x96xf32> to vector<64x96xf32>
    %7 = arith.addf %4, %6 : vector<64x96xf32>
    %8 = vector.shape_cast %7 : vector<64x96xf32> to vector<8x8x96xf32>
    %9 = vector.extract_strided_slice %8 {offsets = [0, 0, 0], sizes = [8, 1, 96], strides = [1, 1, 1]} : vector<8x8x96xf32> to vector<8x1x96xf32>
    %10 = vector.extract_strided_slice %8 {offsets = [0, 0, 0], sizes = [8, 7, 96], strides = [1, 1, 1]} : vector<8x8x96xf32> to vector<8x7x96xf32>
    %11 = tpu.concatenate %9, %10 in 1 : vector<8x1x96xf32>, vector<8x7x96xf32> -> vector<8x8x96xf32>
    %12 = vector.extract_strided_slice %8 {offsets = [0, 1, 0], sizes = [8, 7, 96], strides = [1, 1, 1]} : vector<8x8x96xf32> to vector<8x7x96xf32>
    %13 = vector.extract_strided_slice %8 {offsets = [0, 7, 0], sizes = [8, 1, 96], strides = [1, 1, 1]} : vector<8x8x96xf32> to vector<8x1x96xf32>
    %14 = tpu.concatenate %12, %13 in 1 : vector<8x7x96xf32>, vector<8x1x96xf32> -> vector<8x8x96xf32>
    %cst_7 = arith.constant 7.500000e-01 : f32
    %15 = vector.broadcast %cst_7 : f32 to vector<8x8x96xf32>
    %16 = arith.mulf %15, %8 : vector<8x8x96xf32>
    %cst_8 = arith.constant 2.500000e-01 : f32
    %17 = vector.broadcast %cst_8 : f32 to vector<8x8x96xf32>
    %18 = arith.mulf %17, %11 : vector<8x8x96xf32>
    %19 = arith.addf %16, %18 : vector<8x8x96xf32>
    %cst_9 = arith.constant 7.500000e-01 : f32
    %20 = vector.broadcast %cst_9 : f32 to vector<8x8x96xf32>
    %21 = arith.mulf %20, %8 : vector<8x8x96xf32>
    %cst_10 = arith.constant 2.500000e-01 : f32
    %22 = vector.broadcast %cst_10 : f32 to vector<8x8x96xf32>
    %23 = arith.mulf %22, %14 : vector<8x8x96xf32>
    %24 = arith.addf %21, %23 : vector<8x8x96xf32>
    %25 = vector.shape_cast %19 : vector<8x8x96xf32> to vector<8x8x1x96xf32>
    %26 = vector.shape_cast %24 : vector<8x8x96xf32> to vector<8x8x1x96xf32>
    %27 = tpu.concatenate %25, %26 in 2 : vector<8x8x1x96xf32>, vector<8x8x1x96xf32> -> vector<8x8x2x96xf32>
    %28 = vector.shape_cast %27 : vector<8x8x2x96xf32> to vector<8x16x96xf32>
    %29 = vector.extract_strided_slice %28 {offsets = [0, 0, 0], sizes = [1, 16, 96], strides = [1, 1, 1]} : vector<8x16x96xf32> to vector<1x16x96xf32>
    %30 = vector.extract_strided_slice %28 {offsets = [0, 0, 0], sizes = [7, 16, 96], strides = [1, 1, 1]} : vector<8x16x96xf32> to vector<7x16x96xf32>
    %31 = tpu.concatenate %29, %30 in 0 : vector<1x16x96xf32>, vector<7x16x96xf32> -> vector<8x16x96xf32>
    %32 = vector.extract_strided_slice %28 {offsets = [1, 0, 0], sizes = [7, 16, 96], strides = [1, 1, 1]} : vector<8x16x96xf32> to vector<7x16x96xf32>
    %33 = vector.extract_strided_slice %28 {offsets = [7, 0, 0], sizes = [1, 16, 96], strides = [1, 1, 1]} : vector<8x16x96xf32> to vector<1x16x96xf32>
    %34 = tpu.concatenate %32, %33 in 0 : vector<7x16x96xf32>, vector<1x16x96xf32> -> vector<8x16x96xf32>
    %cst_11 = arith.constant 7.500000e-01 : f32
    %35 = vector.broadcast %cst_11 : f32 to vector<8x16x96xf32>
    %36 = arith.mulf %35, %28 : vector<8x16x96xf32>
    %cst_12 = arith.constant 2.500000e-01 : f32
    %37 = vector.broadcast %cst_12 : f32 to vector<8x16x96xf32>
    %38 = arith.mulf %37, %31 : vector<8x16x96xf32>
    %39 = arith.addf %36, %38 : vector<8x16x96xf32>
    %cst_13 = arith.constant 0.000000e+00 : f32
    %40 = vector.broadcast %cst_13 : f32 to vector<8x16x96xf32>
    %41 = arith.maximumf %39, %40 : vector<8x16x96xf32>
    %cst_14 = arith.constant 7.500000e-01 : f32
    %42 = vector.broadcast %cst_14 : f32 to vector<8x16x96xf32>
    %43 = arith.mulf %42, %28 : vector<8x16x96xf32>
    %cst_15 = arith.constant 2.500000e-01 : f32
    %44 = vector.broadcast %cst_15 : f32 to vector<8x16x96xf32>
    %45 = arith.mulf %44, %34 : vector<8x16x96xf32>
    %46 = arith.addf %43, %45 : vector<8x16x96xf32>
    %cst_16 = arith.constant 0.000000e+00 : f32
    %47 = vector.broadcast %cst_16 : f32 to vector<8x16x96xf32>
    %48 = arith.maximumf %46, %47 : vector<8x16x96xf32>
    %49 = vector.shape_cast %41 : vector<8x16x96xf32> to vector<8x1x16x96xf32>
    %50 = vector.shape_cast %48 : vector<8x16x96xf32> to vector<8x1x16x96xf32>
    %51 = tpu.concatenate %49, %50 in 1 : vector<8x1x16x96xf32>, vector<8x1x16x96xf32> -> vector<8x2x16x96xf32>
    %52 = vector.shape_cast %51 : vector<8x2x16x96xf32> to vector<16x16x96xf32>
    %c0_17 = arith.constant 0 : index
    %c0_18 = arith.constant 0 : index
    %c0_19 = arith.constant 0 : index
    %c0_20 = arith.constant 0 : index
    %53 = vector.load %arg4[%c0_17, %c0_18, %c0_19, %c0_20] : memref<1x16x16x96xf32, #tpu.memory_space<vmem>>, vector<1x16x16x96xf32>
    %54 = vector.shape_cast %53 : vector<1x16x16x96xf32> to vector<16x16x96xf32>
    %55 = vector.shape_cast %52 : vector<16x16x96xf32> to vector<1x16x16x96xf32>
    tpu.vector_store %arg4[%c0_17, %c0_18, %c0_19, %c0_20], %55 {strides = array<i32>} : memref<1x16x16x96xf32, #tpu.memory_space<vmem>>, vector<1x16x16x96xf32>,
    return
  }
  func.func @transform_0(%arg0: i32) -> (i32, i32, i32, i32) {
    %c0_i32 = arith.constant 0 : i32
    %c0_i32_0 = arith.constant 0 : i32
    %c0_i32_1 = arith.constant 0 : i32
    %c0_i32_2 = arith.constant 0 : i32
    return %arg0, %c0_i32, %c0_i32_0, %c0_i32_1 : i32, i32, i32, i32
  }
  func.func @transform_1(%arg0: i32) -> (i32, i32) {
    %c0_i32 = arith.constant 0 : i32
    %c0_i32_0 = arith.constant 0 : i32
    %c0_i32_1 = arith.constant 0 : i32
    return %c0_i32, %c0_i32_0 : i32, i32
  }
  func.func @transform_2(%arg0: i32) -> (i32, i32) {
    %c0_i32 = arith.constant 0 : i32
    %c0_i32_0 = arith.constant 0 : i32
    %c0_i32_1 = arith.constant 0 : i32
    return %c0_i32, %c0_i32_0 : i32, i32
  }
  func.func @transform_3(%arg0: i32) -> (i32, i32, i32, i32) {
    %c0_i32 = arith.constant 0 : i32
    %c0_i32_0 = arith.constant 0 : i32
    %c0_i32_1 = arith.constant 0 : i32
    %c0_i32_2 = arith.constant 0 : i32
    return %arg0, %c0_i32, %c0_i32_0, %c0_i32_1 : i32, i32, i32, i32
  }
}

</mosaic_0001>

<llo_original>
// kernel: tpu_custom_call.1
$region0: #{tpu_custom_call.1}
  #allocation0 [shape = 'u32[]', space=smem, size = 0x4, offset = 0x4, fixed_abs, tag = 'smem constant byte address 0x4 - core index']
  #allocation1 [shape = 'u32[72,128]{1,0:T(1,128)}', space=vmem, size = 0x9000, scoped, tag = 'internal scratch']
  %s0 = inlined_call_operand.hbm [shape: f32[2,8,8,96], index: 0, kind: input, shape index: {}]
  %s1 = inlined_call_operand.hbm [shape: f32[96,96], index: 1, kind: input, shape index: {}]
  %s2 = inlined_call_operand.vmem [shape: f32[1,96], index: 2, kind: input, shape index: {}]
  %s3 = inlined_call_operand.hbm [shape: f32[2,16,16,96], index: 3, kind: output, shape index: {}]
  %s4 = sld [smem:[#allocation0]]
  $region53: #{tpu_custom_call.1} parent=0
    _
  %s6 = ssub.s32 1, %s4
  %s7 = scalar_select 0, %s6, %s4
  $region1: #{tpu_custom_call.1} parent=0
    #allocation2 [shape = 'u8[65536]{0}', space=vmem, size = 0x10000, scoped, tag = 'input window, operand 0']
    #allocation3 [shape = 's32[2]{0}', space=sflag, size = 0x8, scoped, tag = 'scoped memory for tpu_custom_call.1']
    #allocation4 [shape = 's32[2]{0}', space=sflag, size = 0x8, scoped, tag = 'scoped memory for tpu_custom_call.1']
    #allocation5 [shape = 'u8[49152]{0}', space=vmem, size = 0xc000, scoped, tag = 'input window, operand 1, single buffered']
    #allocation6 [shape = 's32[1]{0}', space=sflag, size = 0x4, scoped, tag = 'scoped memory for tpu_custom_call.1']
    #allocation7 [shape = 'u8[262144]{0}', space=vmem, size = 0x40000, scoped, tag = 'output window, operand 0']
    %8 = vsyncpa [#allocation3], 0
    %s9 = scalar_lea.sflag [#allocation3], 1
    %10 = vsyncpa %s9, 0
    %11 = vsyncpa [#allocation6], 0
    %12 = vsyncpa [#allocation4], 0
    %s13 = scalar_lea.sflag [#allocation4], 1
    %14 = vsyncpa %s13, 0
    loop: start=0, step=1, limit=4
    $region2: #{tpu_custom_call.1} parent=1 // loop_pre_header
      _
    $region3: #{tpu_custom_call.1} parent=1 // loop_header
      %s16 = sphi 0, %s20
      %p17 = scmp.ge.s32.totalorder %s16, 4
      %s26 = sphi 0, %s28
      %s29 = sphi 0, %s26
      %s30 = sphi 0, %s29
      %s46 = sphi 0, %s30
      %s50 = sphi 0, %s50
      %s52 = sphi 0, %s50
      %s53 = sphi 0, %s52
      %s67 = sphi 0, %s53
      %s71 = sphi 0, %s71
      %s73 = sphi 0, %s71
      %s74 = sphi 0, %s73
      %s88 = sphi 0, %s74
      %s94 = sphi 0, %s96
      %s97 = sphi 0, %s94
      %s98 = sphi 0, %s97
      %s114 = sphi 0, %s98
    $region4: #{tpu_custom_call.1} parent=1 // loop_header_branch
      %19 = sbr.rel (%p17) target = $region8
    $region5: #{tpu_custom_call.1} parent=1 // loop_body
      %s21 = ssub.s32 %s16, 1
      %s22 = ssub.s32 %s16, 2
      %s23 = sadd.s32 %s16, 1
      %s24 = ssub.s32 %s16, %s23
      %p25 = scmp.eq.s32.totalorder %s24, 0
      %s27 = sadd.s32 %s26, 1
      %s28 = scalar_select %p25, %s26, %s27
      %p31 = pneg %p25
      %p32 = scmp.eq.s32.totalorder %s16, 1
      %p33 = por %p31, %p32
      %p34 = scmp.ne.s32.totalorder %s26, %s29
      %p35 = scmp.eq.s32.totalorder %s16, 0
      %p36 = por %p34, %p35
      %p37 = scmp.ne.s32.totalorder %s26, %s29
      %p38 = scmp.eq.s32.totalorder %s21, 1
      %p39 = por %p37, %p38
      %p40 = scmp.ne.s32.totalorder %s29, %s30
      %p41 = scmp.eq.s32.totalorder %s21, 0
      %p42 = por %p40, %p41
      %p43 = scmp.ne.s32.totalorder %s29, %s30
      %p44 = scmp.eq.s32.totalorder %s22, 1
      %p45 = por %p43, %p44
      %p47 = scmp.ne.s32.totalorder %s30, %s46
      %p48 = scmp.eq.s32.totalorder %s22, 0
      %p49 = por %p47, %p48
      %s51 = sadd.s32 %s50, 1
      %p54 = scmp.eq.s32.totalorder %s16, 1
      %p55 = scmp.ne.s32.totalorder %s50, %s52
      %p56 = scmp.eq.s32.totalorder %s16, 0
      %p57 = por %p55, %p56
      %p58 = scmp.ne.s32.totalorder %s50, %s52
      %p59 = scmp.eq.s32.totalorder %s21, 1
      %p60 = por %p58, %p59
      %p61 = scmp.ne.s32.totalorder %s52, %s53
      %p62 = scmp.eq.s32.totalorder %s21, 0
      %p63 = por %p61, %p62
      %p64 = scmp.ne.s32.totalorder %s52, %s53
      %p65 = scmp.eq.s32.totalorder %s22, 1
      %p66 = por %p64, %p65
      %p68 = scmp.ne.s32.totalorder %s53, %s67
      %p69 = scmp.eq.s32.totalorder %s22, 0
      %p70 = por %p68, %p69
      %s72 = sadd.s32 %s71, 1
      %p75 = scmp.eq.s32.totalorder %s16, 1
      %p76 = scmp.ne.s32.totalorder %s71, %s73
      %p77 = scmp.eq.s32.totalorder %s16, 0
      %p78 = por %p76, %p77
      %p79 = scmp.ne.s32.totalorder %s71, %s73
      %p80 = scmp.eq.s32.totalorder %s21, 1
      %p81 = por %p79, %p80
      %p82 = scmp.ne.s32.totalorder %s73, %s74
      %p83 = scmp.eq.s32.totalorder %s21, 0
      %p84 = por %p82, %p83
      %p85 = scmp.ne.s32.totalorder %s73, %s74
      %p86 = scmp.eq.s32.totalorder %s22, 1
      %p87 = por %p85, %p86
      %p89 = scmp.ne.s32.totalorder %s74, %s88
      %p90 = scmp.eq.s32.totalorder %s22, 0
      %p91 = por %p89, %p90
      %s92 = ssub.s32 %s16, %s23
      %p93 = scmp.eq.s32.totalorder %s92, 0
      %s95 = sadd.s32 %s94, 1
      %s96 = scalar_select %p93, %s94, %s95
      %p99 = pneg %p93
      %p100 = scmp.eq.s32.totalorder %s16, 1
      %p101 = por %p99, %p100
      %p102 = scmp.ne.s32.totalorder %s94, %s97
      %p103 = scmp.eq.s32.totalorder %s16, 0
      %p104 = por %p102, %p103
      %p105 = scmp.ne.s32.totalorder %s94, %s97
      %p106 = scmp.eq.s32.totalorder %s21, 1
      %p107 = por %p105, %p106
      %p108 = scmp.ne.s32.totalorder %s97, %s98
      %p109 = scmp.eq.s32.totalorder %s21, 0
      %p110 = por %p108, %p109
      %p111 = scmp.ne.s32.totalorder %s97, %s98
      %p112 = scmp.eq.s32.totalorder %s22, 1
      %p113 = por %p111, %p112
      %p115 = scmp.ne.s32.totalorder %s98, %s114
      %p116 = scmp.eq.s32.totalorder %s22, 0
      %p117 = por %p115, %p116
      %p118 = scmp.le.s32.totalorder 1, %s16
      %p119 = scmp.lt.s32.totalorder %s16, 3
      %p120 = pnand %p118, %p119
      %p121 = pneg %p120
      // Predicated region
      $region9: #{tpu_custom_call.1} parent=5 // pred_check
        _
      $region10: #{tpu_custom_call.1} parent=5 // pred_check_branch
        %123 = sbr.rel (%p120) target = $region12
      $region11: #{tpu_custom_call.1} parent=5 // pred_region
        %s124 = ssub.s32 %s16, 1
        // Predicated region
        $region13: #{tpu_custom_call.1} parent=11 // pred_check
          %p125 = pneg %p63
        $region14: #{tpu_custom_call.1} parent=11 // pred_check_branch
          %127 = sbr.rel (%p125) target = $region16
        $region15: #{tpu_custom_call.1} parent=11 // pred_region
          %129 = vsyncadd [#allocation6], 0
          %s130 = sshll.u32 %s1, 4
          %s131 = int_to_ptr.hbm [resolvable:$true] %s130
          %s132 = sshll.u32 [#allocation5], 4
          %s133 = int_to_ptr.vmem [resolvable:$true] %s132
          %138 = dma.hbm_to_vmem [thread:$0]  %s131, 1536, %s133, [#allocation6], 128, 128, 8
        $region16: #{tpu_custom_call.1} parent=11 // pred_fallthru
          _
        // Predicated region
        $region17: #{tpu_custom_call.1} parent=11 // pred_check
          %p139 = pneg %p84
        $region18: #{tpu_custom_call.1} parent=11 // pred_check_branch
          %141 = sbr.rel (%p139) target = $region20
        $region19: #{tpu_custom_call.1} parent=11 // pred_region
          _
        $region20: #{tpu_custom_call.1} parent=11 // pred_fallthru
          _
      $region12: #{tpu_custom_call.1} parent=5 // pred_fallthru
        _
      %p142 = scmp.lt.s32.totalorder %s16, 2
      // Predicated region
      $region21: #{tpu_custom_call.1} parent=5 // pred_check
        %p143 = pneg %p142
      $region22: #{tpu_custom_call.1} parent=5 // pred_check_branch
        %145 = sbr.rel (%p143) target = $region24
      $region23: #{tpu_custom_call.1} parent=5 // pred_region
        // Predicated region
        $region25: #{tpu_custom_call.1} parent=23 // pred_check
          %p146 = pneg %p36
        $region26: #{tpu_custom_call.1} parent=23 // pred_check_branch
          %148 = sbr.rel (%p146) target = $region28
        $region27: #{tpu_custom_call.1} parent=23 // pred_region
          %s149 = sand.u32 %s26, 1
          %s150 = scalar_lea.sflag [#allocation3], %s149
          %s151 = sand.u32 %s26, 1
          %s152 = smul.addr %s151, 64
          %s153 = scalar_lea.vmem [#allocation2], %s152
          %155 = vsyncadd %s150, 0
          %s156 = smul.addr %s16, 8
          %s157 = smul.addr %s156, 8
          %s158 = scalar_lea.hbm %s0, %s157
          %s159 = sshll.u32 %s158, 4
          %s160 = int_to_ptr.hbm [resolvable:$true] %s159
          %s161 = sshll.u32 %s153, 4
          %s162 = int_to_ptr.vmem [resolvable:$true] %s161
          %167 = dma.hbm_to_vmem [thread:$0]  %s160, 1024, %s162, %s150, 128, 128, 8
        $region28: #{tpu_custom_call.1} parent=23 // pred_fallthru
          _
      $region24: #{tpu_custom_call.1} parent=5 // pred_fallthru
        _
      %p168 = scmp.le.s32.totalorder 1, %s16
      %p169 = scmp.lt.s32.totalorder %s16, 3
      %p170 = pnand %p168, %p169
      %p171 = pneg %p170
      // Predicated region
      $region29: #{tpu_custom_call.1} parent=5 // pred_check
        _
      $region30: #{tpu_custom_call.1} parent=5 // pred_check_branch
        %173 = sbr.rel (%p170) target = $region32
      $region31: #{tpu_custom_call.1} parent=5 // pred_region
        %s174 = ssub.s32 %s16, 1
        %s175 = sand.u32 %s29, 1
        %s176 = scalar_lea.sflag [#allocation3], %s175
        %s177 = sand.u32 %s29, 1
        %s178 = smul.addr %s177, 64
        %s179 = scalar_lea.vmem [#allocation2], %s178
        // Predicated region
        $region33: #{tpu_custom_call.1} parent=31 // pred_check
          %p180 = pneg %p42
        $region34: #{tpu_custom_call.1} parent=31 // pred_check_branch
          %182 = sbr.rel (%p180) target = $region36
        $region35: #{tpu_custom_call.1} parent=31 // pred_region
          %184 = dma.done %s176, 1024
        $region36: #{tpu_custom_call.1} parent=31 // pred_fallthru
          _
        // Predicated region
        $region37: #{tpu_custom_call.1} parent=31 // pred_check
          %p185 = pneg %p63
        $region38: #{tpu_custom_call.1} parent=31 // pred_check_branch
          %187 = sbr.rel (%p185) target = $region40
        $region39: #{tpu_custom_call.1} parent=31 // pred_region
          %189 = dma.done [#allocation6], 1536
        $region40: #{tpu_custom_call.1} parent=31 // pred_fallthru
          _
        %s190 = sand.u32 %s29, 1
        %s191 = scalar_lea.sflag [#allocation3], %s190
        %s192 = sand.u32 %s29, 1
        %s193 = smul.addr %s192, 64
        %s194 = scalar_lea.vmem [#allocation2], %s193
        %p195 = pneg %p42
        %p196 = pneg %p39
        %p197 = pneg %p63
        %p198 = pneg %p60
        %p199 = pneg %p84
        %p200 = pneg %p81
        %p201 = pneg %p110
        %p202 = pneg %p107
        %s203 = sand.u32 %s97, 1
        %s204 = scalar_lea.sflag [#allocation4], %s203
        %s205 = sand.u32 %s97, 1
        %s206 = smul.addr %s205, 256
        %s207 = scalar_lea.vmem [#allocation7], %s206
        %v208 = vld [vmem:[%s179] sm:$0xff]
        %v209 = vld [vmem:[%s179 + $0x8] sm:$0xff]
        %v210 = vld [vmem:[%s179 + $0x10] sm:$0xff]
        %v211 = vld [vmem:[%s179 + $0x18] sm:$0xff]
        %v212 = vld [vmem:[%s179 + $0x20] sm:$0xff]
        %v213 = vld [vmem:[%s179 + $0x28] sm:$0xff]
        %v214 = vld [vmem:[%s179 + $0x30] sm:$0xff]
        %v215 = vld [vmem:[%s179 + $0x38] sm:$0xff]
        %v216 = vld [vmem:[#allocation5] sm:$0xff]
        %v217 = vld [vmem:[#allocation5 + $0x8] sm:$0xff]
        %v218 = vld [vmem:[#allocation5 + $0x10] sm:$0xff]
        %v219 = vld [vmem:[#allocation5 + $0x18] sm:$0xff]
        %v220 = vld [vmem:[#allocation5 + $0x20] sm:$0xff]
        %v221 = vld [vmem:[#allocation5 + $0x28] sm:$0xff]
        %v222 = vld [vmem:[#allocation5 + $0x30] sm:$0xff]
        %v223 = vld [vmem:[#allocation5 + $0x38] sm:$0xff]
        %v224 = vld [vmem:[#allocation5 + $0x40] sm:$0xff]
        %v225 = vld [vmem:[#allocation5 + $0x48] sm:$0xff]
        %v226 = vld [vmem:[#allocation5 + $0x50] sm:$0xff]
        %v227 = vld [vmem:[#allocation5 + $0x58] sm:$0xff]
        %v228 = vld [vmem:[%s2] sm:$0x1]
        %v230 = vperm.slane %v228, 0
        %vm232 = vcmask 785408
        %v234 = vsel %vm232, %v208, 0
        %v237 = vsel %vm232, %v209, 0
        %v240 = vsel %vm232, %v210, 0
        %v243 = vsel %vm232, %v211, 0
        %v246 = vsel %vm232, %v212, 0
        %v249 = vsel %vm232, %v213, 0
        %v252 = vsel %vm232, %v214, 0
        %v255 = vsel %vm232, %v215, 0
        %257 = vmatpush.msra.mxu0 0.0
        %258 = vmatpush.msra.mxu0 0.0
        %259 = vmatpush.msra.mxu0 0.0
        %260 = vmatpush.msra.mxu0 0.0
        %261 = vmatpush.msra.mxu0 %v227
        %262 = vmatpush.msra.mxu0 %v226
        %263 = vmatpush.msra.mxu0 %v225
        %264 = vmatpush.msra.mxu0 %v224
        %265 = vmatpush.msra.mxu0 %v223
        %266 = vmatpush.msra.mxu0 %v222
        %267 = vmatpush.msra.mxu0 %v221
        %268 = vmatpush.msra.mxu0 %v220
        %269 = vmatpush.msra.mxu0 %v219
        %270 = vmatpush.msra.mxu0 %v218
        %271 = vmatpush.msra.mxu0 %v217
        %272 = vmatpush.msra.mxu0 %v216
        %273 = vmatmul.f32.gmra.mxu0 %v234
        %v274 = vpop.f32.mrf.mxu0
        %v275 = vadd.f32 %v230, %v274
        %276 = vmatmul.f32.gmra.mxu0 %v237
        %v277 = vpop.f32.mrf.mxu0
        %v278 = vadd.f32 %v230, %v277
        %279 = vmatmul.f32.gmra.mxu0 %v240
        %v280 = vpop.f32.mrf.mxu0
        %v281 = vadd.f32 %v230, %v280
        %282 = vmatmul.f32.gmra.mxu0 %v243
        %v283 = vpop.f32.mrf.mxu0
        %v284 = vadd.f32 %v230, %v283
        %285 = vmatmul.f32.gmra.mxu0 %v246
        %v286 = vpop.f32.mrf.mxu0
        %v287 = vadd.f32 %v230, %v286
        %288 = vmatmul.f32.gmra.mxu0 %v249
        %v289 = vpop.f32.mrf.mxu0
        %v290 = vadd.f32 %v230, %v289
        %291 = vmatmul.f32.gmra.mxu0 %v252
        %v292 = vpop.f32.mrf.mxu0
        %v293 = vadd.f32 %v230, %v292
        %294 = vmatmul.f32.gmra.mxu0 %v255
        %v295 = vpop.f32.mrf.mxu0
        %v296 = vadd.f32 %v230, %v295
        %297 = vdwg.mxu0
        %v306 = vrot.slane %v275, 7
        %v307 = vrot.slane %v278, 7
        %v308 = vrot.slane %v281, 7
        %v309 = vrot.slane %v284, 7
        %v310 = vrot.slane %v287, 7
        %v311 = vrot.slane %v290, 7
        %v312 = vrot.slane %v293, 7
        %v313 = vrot.slane %v296, 7
        %vm322 = vcmask 1040384
        %v323 = vsel %vm322, %v275, %v306
        %v324 = vsel %vm322, %v278, %v307
        %v325 = vsel %vm322, %v281, %v308
        %v326 = vsel %vm322, %v284, %v309
        %v327 = vsel %vm322, %v287, %v310
        %v328 = vsel %vm322, %v290, %v311
        %v329 = vsel %vm322, %v293, %v312
        %v330 = vsel %vm322, %v296, %v313
        %v331 = vrot.slane %v275, 1
        %v332 = vrot.slane %v278, 1
        %v333 = vrot.slane %v281, 1
        %v334 = vrot.slane %v284, 1
        %v335 = vrot.slane %v287, 1
        %v336 = vrot.slane %v290, 1
        %v337 = vrot.slane %v293, 1
        %v338 = vrot.slane %v296, 1
        %vm347 = vcmask 1046528
        %v348 = vsel %vm347, %v331, %v275
        %v349 = vsel %vm347, %v332, %v278
        %v350 = vsel %vm347, %v333, %v281
        %v351 = vsel %vm347, %v334, %v284
        %v352 = vsel %vm347, %v335, %v287
        %v353 = vsel %vm347, %v336, %v290
        %v354 = vsel %vm347, %v337, %v293
        %v355 = vsel %vm347, %v338, %v296
        %v356 = vmul.f32 %v275, 0.75
        %v357 = vmul.f32 %v278, 0.75
        %v358 = vmul.f32 %v281, 0.75
        %v359 = vmul.f32 %v284, 0.75
        %v360 = vmul.f32 %v287, 0.75
        %v361 = vmul.f32 %v290, 0.75
        %v362 = vmul.f32 %v293, 0.75
        %v363 = vmul.f32 %v296, 0.75
        %v364 = vmul.f32 %v323, 0.25
        %v365 = vmul.f32 %v324, 0.25
        %v366 = vmul.f32 %v325, 0.25
        %v367 = vmul.f32 %v326, 0.25
        %v368 = vmul.f32 %v327, 0.25
        %v369 = vmul.f32 %v328, 0.25
        %v370 = vmul.f32 %v329, 0.25
        %v371 = vmul.f32 %v330, 0.25
        %v372 = vadd.f32 %v356, %v364
        %v373 = vadd.f32 %v357, %v365
        %v374 = vadd.f32 %v358, %v366
        %v375 = vadd.f32 %v359, %v367
        %v376 = vadd.f32 %v360, %v368
        %v377 = vadd.f32 %v361, %v369
        %v378 = vadd.f32 %v362, %v370
        %v379 = vadd.f32 %v363, %v371
        %v380 = vmul.f32 %v348, 0.25
        %v381 = vmul.f32 %v349, 0.25
        %v382 = vmul.f32 %v350, 0.25
        %v383 = vmul.f32 %v351, 0.25
        %v384 = vmul.f32 %v352, 0.25
        %v385 = vmul.f32 %v353, 0.25
        %v386 = vmul.f32 %v354, 0.25
        %v387 = vmul.f32 %v355, 0.25
        %v388 = vadd.f32 %v356, %v380
        %v389 = vadd.f32 %v357, %v381
        %v390 = vadd.f32 %v358, %v382
        %v391 = vadd.f32 %v359, %v383
        %v392 = vadd.f32 %v360, %v384
        %v393 = vadd.f32 %v361, %v385
        %v394 = vadd.f32 %v362, %v386
        %v395 = vadd.f32 %v363, %v387
        %v404 = vrot.slane %v372, 1
        %v405 = vrot.slane %v372, 2
        %v406 = vrot.slane %v372, 3
        %v407 = vrot.slane %v372, 4
        %v408 = vrot.slane %v372, 5
        %v409 = vrot.slane %v372, 6
        %v410 = vrot.slane %v372, 7
        %v411 = vrot.slane %v373, 1
        %v412 = vrot.slane %v373, 2
        %v413 = vrot.slane %v373, 3
        %v414 = vrot.slane %v373, 4
        %v415 = vrot.slane %v373, 5
        %v416 = vrot.slane %v373, 6
        %v417 = vrot.slane %v373, 7
        %v418 = vrot.slane %v374, 1
        %v419 = vrot.slane %v374, 2
        %v420 = vrot.slane %v374, 3
        %v421 = vrot.slane %v374, 4
        %v422 = vrot.slane %v374, 5
        %v423 = vrot.slane %v374, 6
        %v424 = vrot.slane %v374, 7
        %v425 = vrot.slane %v375, 1
        %v426 = vrot.slane %v375, 2
        %v427 = vrot.slane %v375, 3
        %v428 = vrot.slane %v375, 4
        %v429 = vrot.slane %v375, 5
        %v430 = vrot.slane %v375, 6
        %v431 = vrot.slane %v375, 7
        %v432 = vrot.slane %v376, 1
        %v433 = vrot.slane %v376, 2
        %v434 = vrot.slane %v376, 3
        %v435 = vrot.slane %v376, 4
        %v436 = vrot.slane %v376, 5
        %v437 = vrot.slane %v376, 6
        %v438 = vrot.slane %v376, 7
        %v439 = vrot.slane %v377, 1
        %v440 = vrot.slane %v377, 2
        %v441 = vrot.slane %v377, 3
        %v442 = vrot.slane %v377, 4
        %v443 = vrot.slane %v377, 5
        %v444 = vrot.slane %v377, 6
        %v445 = vrot.slane %v377, 7
        %v446 = vrot.slane %v378, 1
        %v447 = vrot.slane %v378, 2
        %v448 = vrot.slane %v378, 3
        %v449 = vrot.slane %v378, 4
        %v450 = vrot.slane %v378, 5
        %v451 = vrot.slane %v378, 6
        %v452 = vrot.slane %v378, 7
        %v453 = vrot.slane %v379, 1
        %v454 = vrot.slane %v379, 2
        %v455 = vrot.slane %v379, 3
        %v456 = vrot.slane %v379, 4
        %v457 = vrot.slane %v379, 5
        %v458 = vrot.slane %v379, 6
        %v459 = vrot.slane %v379, 7
        %v524 = vrot.slane %v388, 1
        %v525 = vrot.slane %v388, 2
        %v526 = vrot.slane %v388, 3
        %v527 = vrot.slane %v388, 4
        %v528 = vrot.slane %v388, 5
        %v529 = vrot.slane %v388, 6
        %v530 = vrot.slane %v388, 7
        %v531 = vrot.slane %v389, 1
        %v532 = vrot.slane %v389, 2
        %v533 = vrot.slane %v389, 3
        %v534 = vrot.slane %v389, 4
        %v535 = vrot.slane %v389, 5
        %v536 = vrot.slane %v389, 6
        %v537 = vrot.slane %v389, 7
        %v538 = vrot.slane %v390, 1
        %v539 = vrot.slane %v390, 2
        %v540 = vrot.slane %v390, 3
        %v541 = vrot.slane %v390, 4
        %v542 = vrot.slane %v390, 5
        %v543 = vrot.slane %v390, 6
        %v544 = vrot.slane %v390, 7
        %v545 = vrot.slane %v391, 1
        %v546 = vrot.slane %v391, 2
        %v547 = vrot.slane %v391, 3
        %v548 = vrot.slane %v391, 4
        %v549 = vrot.slane %v391, 5
        %v550 = vrot.slane %v391, 6
        %v551 = vrot.slane %v391, 7
        %v552 = vrot.slane %v392, 1
        %v553 = vrot.slane %v392, 2
        %v554 = vrot.slane %v392, 3
        %v555 = vrot.slane %v392, 4
        %v556 = vrot.slane %v392, 5
        %v557 = vrot.slane %v392, 6
        %v558 = vrot.slane %v392, 7
        %v559 = vrot.slane %v393, 1
        %v560 = vrot.slane %v393, 2
        %v561 = vrot.slane %v393, 3
        %v562 = vrot.slane %v393, 4
        %v563 = vrot.slane %v393, 5
        %v564 = vrot.slane %v393, 6
        %v565 = vrot.slane %v393, 7
        %v566 = vrot.slane %v394, 1
        %v567 = vrot.slane %v394, 2
        %v568 = vrot.slane %v394, 3
        %v569 = vrot.slane %v394, 4
        %v570 = vrot.slane %v394, 5
        %v571 = vrot.slane %v394, 6
        %v572 = vrot.slane %v394, 7
        %v573 = vrot.slane %v395, 1
        %v574 = vrot.slane %v395, 2
        %v575 = vrot.slane %v395, 3
        %v576 = vrot.slane %v395, 4
        %v577 = vrot.slane %v395, 5
        %v578 = vrot.slane %v395, 6
        %v579 = vrot.slane %v395, 7
        %v580 = vperm.slane %v388, 0
        %v581 = vperm.slane %v524, 0
        %v582 = vperm.slane %v525, 0
        %v583 = vperm.slane %v526, 0
        %v584 = vperm.slane %v527, 0
        %v585 = vperm.slane %v528, 0
        %v586 = vperm.slane %v529, 0
        %v587 = vperm.slane %v530, 0
        %v588 = vperm.slane %v389, 0
        %v589 = vperm.slane %v531, 0
        %v590 = vperm.slane %v532, 0
        %v591 = vperm.slane %v533, 0
        %v592 = vperm.slane %v534, 0
        %v593 = vperm.slane %v535, 0
        %v594 = vperm.slane %v536, 0
        %v595 = vperm.slane %v537, 0
        %v596 = vperm.slane %v390, 0
        %v597 = vperm.slane %v538, 0
        %v598 = vperm.slane %v539, 0
        %v599 = vperm.slane %v540, 0
        %v600 = vperm.slane %v541, 0
        %v601 = vperm.slane %v542, 0
        %v602 = vperm.slane %v543, 0
        %v603 = vperm.slane %v544, 0
        %v604 = vperm.slane %v391, 0
        %v605 = vperm.slane %v545, 0
        %v606 = vperm.slane %v546, 0
        %v607 = vperm.slane %v547, 0
        %v608 = vperm.slane %v548, 0
        %v609 = vperm.slane %v549, 0
        %v610 = vperm.slane %v550, 0
        %v611 = vperm.slane %v551, 0
        %v612 = vperm.slane %v392, 0
        %v613 = vperm.slane %v552, 0
        %v614 = vperm.slane %v553, 0
        %v615 = vperm.slane %v554, 0
        %v616 = vperm.slane %v555, 0
        %v617 = vperm.slane %v556, 0
        %v618 = vperm.slane %v557, 0
        %v619 = vperm.slane %v558, 0
        %v620 = vperm.slane %v393, 0
        %v621 = vperm.slane %v559, 0
        %v622 = vperm.slane %v560, 0
        %v623 = vperm.slane %v561, 0
        %v624 = vperm.slane %v562, 0
        %v625 = vperm.slane %v563, 0
        %v626 = vperm.slane %v564, 0
        %v627 = vperm.slane %v565, 0
        %v628 = vperm.slane %v394, 0
        %v629 = vperm.slane %v566, 0
        %v630 = vperm.slane %v567, 0
        %v631 = vperm.slane %v568, 0
        %v632 = vperm.slane %v569, 0
        %v633 = vperm.slane %v570, 0
        %v634 = vperm.slane %v571, 0
        %v635 = vperm.slane %v572, 0
        %v636 = vperm.slane %v395, 0
        %v637 = vperm.slane %v573, 0
        %v638 = vperm.slane %v574, 0
        %v639 = vperm.slane %v575, 0
        %v640 = vperm.slane %v576, 0
        %v641 = vperm.slane %v577, 0
        %v642 = vperm.slane %v578, 0
        %v643 = vperm.slane %v579, 0
        %v708 = vsel %vm322, %v372, %v580
        %v709 = vsel %vm322, %v404, %v581
        %v710 = vsel %vm322, %v405, %v582
        %v711 = vsel %vm322, %v406, %v583
        %v712 = vsel %vm322, %v407, %v584
        %v713 = vsel %vm322, %v408, %v585
        %v714 = vsel %vm322, %v409, %v586
        %v715 = vsel %vm322, %v410, %v587
        %v716 = vsel %vm322, %v373, %v588
        %v717 = vsel %vm322, %v411, %v589
        %v718 = vsel %vm322, %v412, %v590
        %v719 = vsel %vm322, %v413, %v591
        %v720 = vsel %vm322, %v414, %v592
        %v721 = vsel %vm322, %v415, %v593
        %v722 = vsel %vm322, %v416, %v594
        %v723 = vsel %vm322, %v417, %v595
        %v724 = vsel %vm322, %v374, %v596
        %v725 = vsel %vm322, %v418, %v597
        %v726 = vsel %vm322, %v419, %v598
        %v727 = vsel %vm322, %v420, %v599
        %v728 = vsel %vm322, %v421, %v600
        %v729 = vsel %vm322, %v422, %v601
        %v730 = vsel %vm322, %v423, %v602
        %v731 = vsel %vm322, %v424, %v603
        %v732 = vsel %vm322, %v375, %v604
        %v733 = vsel %vm322, %v425, %v605
        %v734 = vsel %vm322, %v426, %v606
        %v735 = vsel %vm322, %v427, %v607
        %v736 = vsel %vm322, %v428, %v608
        %v737 = vsel %vm322, %v429, %v609
        %v738 = vsel %vm322, %v430, %v610
        %v739 = vsel %vm322, %v431, %v611
        %v740 = vsel %vm322, %v376, %v612
        %v741 = vsel %vm322, %v432, %v613
        %v742 = vsel %vm322, %v433, %v614
        %v743 = vsel %vm322, %v434, %v615
        %v744 = vsel %vm322, %v435, %v616
        %v745 = vsel %vm322, %v436, %v617
        %v746 = vsel %vm322, %v437, %v618
        %v747 = vsel %vm322, %v438, %v619
        %v748 = vsel %vm322, %v377, %v620
        %v749 = vsel %vm322, %v439, %v621
        %v750 = vsel %vm322, %v440, %v622
        %v751 = vsel %vm322, %v441, %v623
        %v752 = vsel %vm322, %v442, %v624
        %v753 = vsel %vm322, %v443, %v625
        %v754 = vsel %vm322, %v444, %v626
        %v755 = vsel %vm322, %v445, %v627
        %v756 = vsel %vm322, %v378, %v628
        %v757 = vsel %vm322, %v446, %v629
        %v758 = vsel %vm322, %v447, %v630
        %v759 = vsel %vm322, %v448, %v631
        %v760 = vsel %vm322, %v449, %v632
        %v761 = vsel %vm322, %v450, %v633
        %v762 = vsel %vm322, %v451, %v634
        %v763 = vsel %vm322, %v452, %v635
        %v764 = vsel %vm322, %v379, %v636
        %v765 = vsel %vm322, %v453, %v637
        %v766 = vsel %vm322, %v454, %v638
        %v767 = vsel %vm322, %v455, %v639
        %v768 = vsel %vm322, %v456, %v640
        %v769 = vsel %vm322, %v457, %v641
        %v770 = vsel %vm322, %v458, %v642
        %v771 = vsel %vm322, %v459, %v643
        %v772 = vmul.f32 %v708, 0.75
        %v773 = vmul.f32 %v709, 0.75
        %v774 = vmul.f32 %v710, 0.75
        %v775 = vmul.f32 %v711, 0.75
        %v776 = vmul.f32 %v712, 0.75
        %v777 = vmul.f32 %v713, 0.75
        %v778 = vmul.f32 %v714, 0.75
        %v779 = vmul.f32 %v715, 0.75
        %v780 = vmul.f32 %v716, 0.75
        %v781 = vmul.f32 %v717, 0.75
        %v782 = vmul.f32 %v718, 0.75
        %v783 = vmul.f32 %v719, 0.75
        %v784 = vmul.f32 %v720, 0.75
        %v785 = vmul.f32 %v721, 0.75
        %v786 = vmul.f32 %v722, 0.75
        %v787 = vmul.f32 %v723, 0.75
        %v788 = vmul.f32 %v724, 0.75
        %v789 = vmul.f32 %v725, 0.75
        %v790 = vmul.f32 %v726, 0.75
        %v791 = vmul.f32 %v727, 0.75
        %v792 = vmul.f32 %v728, 0.75
        %v793 = vmul.f32 %v729, 0.75
        %v794 = vmul.f32 %v730, 0.75
        %v795 = vmul.f32 %v731, 0.75
        %v796 = vmul.f32 %v732, 0.75
        %v797 = vmul.f32 %v733, 0.75
        %v798 = vmul.f32 %v734, 0.75
        %v799 = vmul.f32 %v735, 0.75
        %v800 = vmul.f32 %v736, 0.75
        %v801 = vmul.f32 %v737, 0.75
        %v802 = vmul.f32 %v738, 0.75
        %v803 = vmul.f32 %v739, 0.75
        %v804 = vmul.f32 %v740, 0.75
        %v805 = vmul.f32 %v741, 0.75
        %v806 = vmul.f32 %v742, 0.75
        %v807 = vmul.f32 %v743, 0.75
        %v808 = vmul.f32 %v744, 0.75
        %v809 = vmul.f32 %v745, 0.75
        %v810 = vmul.f32 %v746, 0.75
        %v811 = vmul.f32 %v747, 0.75
        %v812 = vmul.f32 %v748, 0.75
        %v813 = vmul.f32 %v749, 0.75
        %v814 = vmul.f32 %v750, 0.75
        %v815 = vmul.f32 %v751, 0.75
        %v816 = vmul.f32 %v752, 0.75
        %v817 = vmul.f32 %v753, 0.75
        %v818 = vmul.f32 %v754, 0.75
        %v819 = vmul.f32 %v755, 0.75
        %v820 = vmul.f32 %v756, 0.75
        %v821 = vmul.f32 %v757, 0.75
        %v822 = vmul.f32 %v758, 0.75
        %v823 = vmul.f32 %v759, 0.75
        %v824 = vmul.f32 %v760, 0.75
        %v825 = vmul.f32 %v761, 0.75
        %v826 = vmul.f32 %v762, 0.75
        %v827 = vmul.f32 %v763, 0.75
        %v828 = vmul.f32 %v764, 0.75
        %v829 = vmul.f32 %v765, 0.75
        %v830 = vmul.f32 %v766, 0.75
        %v831 = vmul.f32 %v767, 0.75
        %v832 = vmul.f32 %v768, 0.75
        %v833 = vmul.f32 %v769, 0.75
        %v834 = vmul.f32 %v770, 0.75
        %v835 = vmul.f32 %v771, 0.75
        %v836 = vmul.f32 %v708, 0.25
        %v837 = vmul.f32 %v709, 0.25
        %v838 = vmul.f32 %v710, 0.25
        %v839 = vmul.f32 %v711, 0.25
        %v840 = vmul.f32 %v712, 0.25
        %v841 = vmul.f32 %v713, 0.25
        %v842 = vmul.f32 %v714, 0.25
        %v843 = vmul.f32 %v715, 0.25
        %v844 = vmul.f32 %v716, 0.25
        %v845 = vmul.f32 %v717, 0.25
        %v846 = vmul.f32 %v718, 0.25
        %v847 = vmul.f32 %v719, 0.25
        %v848 = vmul.f32 %v720, 0.25
        %v849 = vmul.f32 %v721, 0.25
        %v850 = vmul.f32 %v722, 0.25
        %v851 = vmul.f32 %v723, 0.25
        %v852 = vmul.f32 %v724, 0.25
        %v853 = vmul.f32 %v725, 0.25
        %v854 = vmul.f32 %v726, 0.25
        %v855 = vmul.f32 %v727, 0.25
        %v856 = vmul.f32 %v728, 0.25
        %v857 = vmul.f32 %v729, 0.25
        %v858 = vmul.f32 %v730, 0.25
        %v859 = vmul.f32 %v731, 0.25
        %v860 = vmul.f32 %v732, 0.25
        %v861 = vmul.f32 %v733, 0.25
        %v862 = vmul.f32 %v734, 0.25
        %v863 = vmul.f32 %v735, 0.25
        %v864 = vmul.f32 %v736, 0.25
        %v865 = vmul.f32 %v737, 0.25
        %v866 = vmul.f32 %v738, 0.25
        %v867 = vmul.f32 %v739, 0.25
        %v868 = vmul.f32 %v740, 0.25
        %v869 = vmul.f32 %v741, 0.25
        %v870 = vmul.f32 %v742, 0.25
        %v871 = vmul.f32 %v743, 0.25
        %v872 = vmul.f32 %v744, 0.25
        %v873 = vmul.f32 %v745, 0.25
        %v874 = vmul.f32 %v746, 0.25
        %v875 = vmul.f32 %v747, 0.25
        %v876 = vmul.f32 %v748, 0.25
        %v877 = vmul.f32 %v749, 0.25
        %v878 = vmul.f32 %v750, 0.25
        %v879 = vmul.f32 %v751, 0.25
        %v880 = vmul.f32 %v752, 0.25
        %v881 = vmul.f32 %v753, 0.25
        %v882 = vmul.f32 %v754, 0.25
        %v883 = vmul.f32 %v755, 0.25
        %v884 = vmul.f32 %v756, 0.25
        %v885 = vmul.f32 %v757, 0.25
        %v886 = vmul.f32 %v758, 0.25
        %v887 = vmul.f32 %v759, 0.25
        %v888 = vmul.f32 %v760, 0.25
        %v889 = vmul.f32 %v761, 0.25
        %v890 = vmul.f32 %v762, 0.25
        %v891 = vmul.f32 %v763, 0.25
        %v892 = vadd.f32 %v772, %v836
        %v893 = vadd.f32 %v773, %v837
        %v894 = vadd.f32 %v774, %v838
        %v895 = vadd.f32 %v775, %v839
        %v896 = vadd.f32 %v776, %v840
        %v897 = vadd.f32 %v777, %v841
        %v898 = vadd.f32 %v778, %v842
        %v899 = vadd.f32 %v779, %v843
        %v900 = vadd.f32 %v780, %v836
        %v901 = vadd.f32 %v781, %v837
        %v902 = vadd.f32 %v782, %v838
        %v903 = vadd.f32 %v783, %v839
        %v904 = vadd.f32 %v784, %v840
        %v905 = vadd.f32 %v785, %v841
        %v906 = vadd.f32 %v786, %v842
        %v907 = vadd.f32 %v787, %v843
        %v908 = vadd.f32 %v788, %v844
        %v909 = vadd.f32 %v789, %v845
        %v910 = vadd.f32 %v790, %v846
        %v911 = vadd.f32 %v791, %v847
        %v912 = vadd.f32 %v792, %v848
        %v913 = vadd.f32 %v793, %v849
        %v914 = vadd.f32 %v794, %v850
        %v915 = vadd.f32 %v795, %v851
        %v916 = vadd.f32 %v796, %v852
        %v917 = vadd.f32 %v797, %v853
        %v918 = vadd.f32 %v798, %v854
        %v919 = vadd.f32 %v799, %v855
        %v920 = vadd.f32 %v800, %v856
        %v921 = vadd.f32 %v801, %v857
        %v922 = vadd.f32 %v802, %v858
        %v923 = vadd.f32 %v803, %v859
        %v924 = vadd.f32 %v804, %v860
        %v925 = vadd.f32 %v805, %v861
        %v926 = vadd.f32 %v806, %v862
        %v927 = vadd.f32 %v807, %v863
        %v928 = vadd.f32 %v808, %v864
        %v929 = vadd.f32 %v809, %v865
        %v930 = vadd.f32 %v810, %v866
        %v931 = vadd.f32 %v811, %v867
        %v932 = vadd.f32 %v812, %v868
        %v933 = vadd.f32 %v813, %v869
        %v934 = vadd.f32 %v814, %v870
        %v935 = vadd.f32 %v815, %v871
        %v936 = vadd.f32 %v816, %v872
        %v937 = vadd.f32 %v817, %v873
        %v938 = vadd.f32 %v818, %v874
        %v939 = vadd.f32 %v819, %v875
        %v940 = vadd.f32 %v820, %v876
        %v941 = vadd.f32 %v821, %v877
        %v942 = vadd.f32 %v822, %v878
        %v943 = vadd.f32 %v823, %v879
        %v944 = vadd.f32 %v824, %v880
        %v945 = vadd.f32 %v825, %v881
        %v946 = vadd.f32 %v826, %v882
        %v947 = vadd.f32 %v827, %v883
        %v948 = vadd.f32 %v828, %v884
        %v949 = vadd.f32 %v829, %v885
        %v950 = vadd.f32 %v830, %v886
        %v951 = vadd.f32 %v831, %v887
        %v952 = vadd.f32 %v832, %v888
        %v953 = vadd.f32 %v833, %v889
        %v954 = vadd.f32 %v834, %v890
        %v955 = vadd.f32 %v835, %v891
        %v956 = vmax.f32 %v892, 0.0
        %v957 = vmax.f32 %v893, 0.0
        %v958 = vmax.f32 %v894, 0.0
        %v959 = vmax.f32 %v895, 0.0
        %v960 = vmax.f32 %v896, 0.0
        %v961 = vmax.f32 %v897, 0.0
        %v962 = vmax.f32 %v898, 0.0
        %v963 = vmax.f32 %v899, 0.0
        %v964 = vmax.f32 %v900, 0.0
        %v965 = vmax.f32 %v901, 0.0
        %v966 = vmax.f32 %v902, 0.0
        %v967 = vmax.f32 %v903, 0.0
        %v968 = vmax.f32 %v904, 0.0
        %v969 = vmax.f32 %v905, 0.0
        %v970 = vmax.f32 %v906, 0.0
        %v971 = vmax.f32 %v907, 0.0
        %v972 = vmax.f32 %v908, 0.0
        %v973 = vmax.f32 %v909, 0.0
        %v974 = vmax.f32 %v910, 0.0
        %v975 = vmax.f32 %v911, 0.0
        %v976 = vmax.f32 %v912, 0.0
        %v977 = vmax.f32 %v913, 0.0
        %v978 = vmax.f32 %v914, 0.0
        %v979 = vmax.f32 %v915, 0.0
        %v980 = vmax.f32 %v916, 0.0
        %v981 = vmax.f32 %v917, 0.0
        %v982 = vmax.f32 %v918, 0.0
        %v983 = vmax.f32 %v919, 0.0
        %v984 = vmax.f32 %v920, 0.0
        %v985 = vmax.f32 %v921, 0.0
        %v986 = vmax.f32 %v922, 0.0
        %v987 = vmax.f32 %v923, 0.0
        %v988 = vmax.f32 %v924, 0.0
        %v989 = vmax.f32 %v925, 0.0
        %v990 = vmax.f32 %v926, 0.0
        %v991 = vmax.f32 %v927, 0.0
        %v992 = vmax.f32 %v928, 0.0
        %v993 = vmax.f32 %v929, 0.0
        %v994 = vmax.f32 %v930, 0.0
        %v995 = vmax.f32 %v931, 0.0
        %v996 = vmax.f32 %v932, 0.0
        %v997 = vmax.f32 %v933, 0.0
        %v998 = vmax.f32 %v934, 0.0
        %v999 = vmax.f32 %v935, 0.0
        %v1000 = vmax.f32 %v936, 0.0
        %v1001 = vmax.f32 %v937, 0.0
        %v1002 = vmax.f32 %v938, 0.0
        %v1003 = vmax.f32 %v939, 0.0
        %v1004 = vmax.f32 %v940, 0.0
        %v1005 = vmax.f32 %v941, 0.0
        %v1006 = vmax.f32 %v942, 0.0
        %v1007 = vmax.f32 %v943, 0.0
        %v1008 = vmax.f32 %v944, 0.0
        %v1009 = vmax.f32 %v945, 0.0
        %v1010 = vmax.f32 %v946, 0.0
        %v1011 = vmax.f32 %v947, 0.0
        %v1012 = vmax.f32 %v948, 0.0
        %v1013 = vmax.f32 %v949, 0.0
        %v1014 = vmax.f32 %v950, 0.0
        %v1015 = vmax.f32 %v951, 0.0
        %v1016 = vmax.f32 %v952, 0.0
        %v1017 = vmax.f32 %v953, 0.0
        %v1018 = vmax.f32 %v954, 0.0
        %v1019 = vmax.f32 %v955, 0.0
        %v1020 = vmul.f32 %v764, 0.25
        %v1021 = vmul.f32 %v765, 0.25
        %v1022 = vmul.f32 %v766, 0.25
        %v1023 = vmul.f32 %v767, 0.25
        %v1024 = vmul.f32 %v768, 0.25
        %v1025 = vmul.f32 %v769, 0.25
        %v1026 = vmul.f32 %v770, 0.25
        %v1027 = vmul.f32 %v771, 0.25
        %v1028 = vadd.f32 %v772, %v844
        %v1029 = vadd.f32 %v773, %v845
        %v1030 = vadd.f32 %v774, %v846
        %v1031 = vadd.f32 %v775, %v847
        %v1032 = vadd.f32 %v776, %v848
        %v1033 = vadd.f32 %v777, %v849
        %v1034 = vadd.f32 %v778, %v850
        %v1035 = vadd.f32 %v779, %v851
        %v1036 = vadd.f32 %v780, %v852
        %v1037 = vadd.f32 %v781, %v853
        %v1038 = vadd.f32 %v782, %v854
        %v1039 = vadd.f32 %v783, %v855
        %v1040 = vadd.f32 %v784, %v856
        %v1041 = vadd.f32 %v785, %v857
        %v1042 = vadd.f32 %v786, %v858
        %v1043 = vadd.f32 %v787, %v859
        %v1044 = vadd.f32 %v788, %v860
        %v1045 = vadd.f32 %v789, %v861
        %v1046 = vadd.f32 %v790, %v862
        %v1047 = vadd.f32 %v791, %v863
        %v1048 = vadd.f32 %v792, %v864
        %v1049 = vadd.f32 %v793, %v865
        %v1050 = vadd.f32 %v794, %v866
        %v1051 = vadd.f32 %v795, %v867
        %v1052 = vadd.f32 %v796, %v868
        %v1053 = vadd.f32 %v797, %v869
        %v1054 = vadd.f32 %v798, %v870
        %v1055 = vadd.f32 %v799, %v871
        %v1056 = vadd.f32 %v800, %v872
        %v1057 = vadd.f32 %v801, %v873
        %v1058 = vadd.f32 %v802, %v874
        %v1059 = vadd.f32 %v803, %v875
        %v1060 = vadd.f32 %v804, %v876
        %v1061 = vadd.f32 %v805, %v877
        %v1062 = vadd.f32 %v806, %v878
        %v1063 = vadd.f32 %v807, %v879
        %v1064 = vadd.f32 %v808, %v880
        %v1065 = vadd.f32 %v809, %v881
        %v1066 = vadd.f32 %v810, %v882
        %v1067 = vadd.f32 %v811, %v883
        %v1068 = vadd.f32 %v812, %v884
        %v1069 = vadd.f32 %v813, %v885
        %v1070 = vadd.f32 %v814, %v886
        %v1071 = vadd.f32 %v815, %v887
        %v1072 = vadd.f32 %v816, %v888
        %v1073 = vadd.f32 %v817, %v889
        %v1074 = vadd.f32 %v818, %v890
        %v1075 = vadd.f32 %v819, %v891
        %v1076 = vadd.f32 %v820, %v1020
        %v1077 = vadd.f32 %v821, %v1021
        %v1078 = vadd.f32 %v822, %v1022
        %v1079 = vadd.f32 %v823, %v1023
        %v1080 = vadd.f32 %v824, %v1024
        %v1081 = vadd.f32 %v825, %v1025
        %v1082 = vadd.f32 %v826, %v1026
        %v1083 = vadd.f32 %v827, %v1027
        %v1084 = vadd.f32 %v828, %v1020
        %v1085 = vadd.f32 %v829, %v1021
        %v1086 = vadd.f32 %v830, %v1022
        %v1087 = vadd.f32 %v831, %v1023
        %v1088 = vadd.f32 %v832, %v1024
        %v1089 = vadd.f32 %v833, %v1025
        %v1090 = vadd.f32 %v834, %v1026
        %v1091 = vadd.f32 %v835, %v1027
        %v1092 = vmax.f32 %v1028, 0.0
        %v1093 = vmax.f32 %v1029, 0.0
        %v1094 = vmax.f32 %v1030, 0.0
        %v1095 = vmax.f32 %v1031, 0.0
        %v1096 = vmax.f32 %v1032, 0.0
        %v1097 = vmax.f32 %v1033, 0.0
        %v1098 = vmax.f32 %v1034, 0.0
        %v1099 = vmax.f32 %v1035, 0.0
        %v1100 = vmax.f32 %v1036, 0.0
        %v1101 = vmax.f32 %v1037, 0.0
        %v1102 = vmax.f32 %v1038, 0.0
        %v1103 = vmax.f32 %v1039, 0.0
        %v1104 = vmax.f32 %v1040, 0.0
        %v1105 = vmax.f32 %v1041, 0.0
        %v1106 = vmax.f32 %v1042, 0.0
        %v1107 = vmax.f32 %v1043, 0.0
        %v1108 = vmax.f32 %v1044, 0.0
        %v1109 = vmax.f32 %v1045, 0.0
        %v1110 = vmax.f32 %v1046, 0.0
        %v1111 = vmax.f32 %v1047, 0.0
        %v1112 = vmax.f32 %v1048, 0.0
        %v1113 = vmax.f32 %v1049, 0.0
        %v1114 = vmax.f32 %v1050, 0.0
        %v1115 = vmax.f32 %v1051, 0.0
        %v1116 = vmax.f32 %v1052, 0.0
        %v1117 = vmax.f32 %v1053, 0.0
        %v1118 = vmax.f32 %v1054, 0.0
        %v1119 = vmax.f32 %v1055, 0.0
        %v1120 = vmax.f32 %v1056, 0.0
        %v1121 = vmax.f32 %v1057, 0.0
        %v1122 = vmax.f32 %v1058, 0.0
        %v1123 = vmax.f32 %v1059, 0.0
        %v1124 = vmax.f32 %v1060, 0.0
        %v1125 = vmax.f32 %v1061, 0.0
        %v1126 = vmax.f32 %v1062, 0.0
        %v1127 = vmax.f32 %v1063, 0.0
        %v1128 = vmax.f32 %v1064, 0.0
        %v1129 = vmax.f32 %v1065, 0.0
        %v1130 = vmax.f32 %v1066, 0.0
        %v1131 = vmax.f32 %v1067, 0.0
        %v1132 = vmax.f32 %v1068, 0.0
        %v1133 = vmax.f32 %v1069, 0.0
        %v1134 = vmax.f32 %v1070, 0.0
        %v1135 = vmax.f32 %v1071, 0.0
        %v1136 = vmax.f32 %v1072, 0.0
        %v1137 = vmax.f32 %v1073, 0.0
        %v1138 = vmax.f32 %v1074, 0.0
        %v1139 = vmax.f32 %v1075, 0.0
        %v1140 = vmax.f32 %v1076, 0.0
        %v1141 = vmax.f32 %v1077, 0.0
        %v1142 = vmax.f32 %v1078, 0.0
        %v1143 = vmax.f32 %v1079, 0.0
        %v1144 = vmax.f32 %v1080, 0.0
        %v1145 = vmax.f32 %v1081, 0.0
        %v1146 = vmax.f32 %v1082, 0.0
        %v1147 = vmax.f32 %v1083, 0.0
        %v1148 = vmax.f32 %v1084, 0.0
        %v1149 = vmax.f32 %v1085, 0.0
        %v1150 = vmax.f32 %v1086, 0.0
        %v1151 = vmax.f32 %v1087, 0.0
        %v1152 = vmax.f32 %v1088, 0.0
        %v1153 = vmax.f32 %v1089, 0.0
        %v1154 = vmax.f32 %v1090, 0.0
        %v1155 = vmax.f32 %v1091, 0.0
        %1284 = vst [vmem:[#allocation1] ss:$4 sm:$0xff] %v956
        %s1285 = scalar_lea.vmem [#allocation1], 1
        %1286 = vst [vmem:[%s1285] ss:$4 sm:$0xff] %v957
        %s1287 = scalar_lea.vmem [#allocation1], 2
        %1288 = vst [vmem:[%s1287] ss:$4 sm:$0xff] %v958
        %s1289 = scalar_lea.vmem [#allocation1], 3
        %1290 = vst [vmem:[%s1289] ss:$4 sm:$0xff] %v959
        %s1291 = scalar_lea.vmem [#allocation1], 32
        %1292 = vst [vmem:[%s1291] ss:$4 sm:$0xff] %v960
        %s1293 = scalar_lea.vmem [#allocation1], 33
        %1294 = vst [vmem:[%s1293] ss:$4 sm:$0xff] %v961
        %s1295 = scalar_lea.vmem [#allocation1], 34
        %1296 = vst [vmem:[%s1295] ss:$4 sm:$0xff] %v962
        %s1297 = scalar_lea.vmem [#allocation1], 35
        %1298 = vst [vmem:[%s1297] ss:$4 sm:$0xff] %v963
        %v1299 = vld.sshfl [vmem:[#allocation1] sm:$0xff pattern:$0x73625140]
        %v1300 = vld.sshfl [vmem:[#allocation1 + $0x20] sm:$0xff pattern:$0x73625140]
        %1301 = vst [vmem:[#allocation1] ss:$4 sm:$0xff] %v1092
        %1302 = vst [vmem:[%s1285] ss:$4 sm:$0xff] %v1093
        %1303 = vst [vmem:[%s1287] ss:$4 sm:$0xff] %v1094
        %1304 = vst [vmem:[%s1289] ss:$4 sm:$0xff] %v1095
        %1305 = vst [vmem:[%s1291] ss:$4 sm:$0xff] %v1096
        %1306 = vst [vmem:[%s1293] ss:$4 sm:$0xff] %v1097
        %1307 = vst [vmem:[%s1295] ss:$4 sm:$0xff] %v1098
        %1308 = vst [vmem:[%s1297] ss:$4 sm:$0xff] %v1099
        %v1309 = vld.sshfl [vmem:[#allocation1] sm:$0xff pattern:$0x73625140]
        %v1310 = vld.sshfl [vmem:[#allocation1 + $0x20] sm:$0xff pattern:$0x73625140]
        %1311 = vst [vmem:[#allocation1] ss:$4 sm:$0xff] %v964
        %1312 = vst [vmem:[%s1285] ss:$4 sm:$0xff] %v965
        %1313 = vst [vmem:[%s1287] ss:$4 sm:$0xff] %v966
        %1314 = vst [vmem:[%s1289] ss:$4 sm:$0xff] %v967
        %1315 = vst [vmem:[%s1291] ss:$4 sm:$0xff] %v968
        %1316 = vst [vmem:[%s1293] ss:$4 sm:$0xff] %v969
        %1317 = vst [vmem:[%s1295] ss:$4 sm:$0xff] %v970
        %1318 = vst [vmem:[%s1297] ss:$4 sm:$0xff] %v971
        %v1319 = vld.sshfl [vmem:[#allocation1] sm:$0xff pattern:$0x73625140]
        %v1320 = vld.sshfl [vmem:[#allocation1 + $0x20] sm:$0xff pattern:$0x73625140]
        %1321 = vst [vmem:[#allocation1] ss:$4 sm:$0xff] %v1100
        %1322 = vst [vmem:[%s1285] ss:$4 sm:$0xff] %v1101
        %1323 = vst [vmem:[%s1287] ss:$4 sm:$0xff] %v1102
        %1324 = vst [vmem:[%s1289] ss:$4 sm:$0xff] %v1103
        %1325 = vst [vmem:[%s1291] ss:$4 sm:$0xff] %v1104
        %1326 = vst [vmem:[%s1293] ss:$4 sm:$0xff] %v1105
        %1327 = vst [vmem:[%s1295] ss:$4 sm:$0xff] %v1106
        %1328 = vst [vmem:[%s1297] ss:$4 sm:$0xff] %v1107
        %v1329 = vld.sshfl [vmem:[#allocation1] sm:$0xff pattern:$0x73625140]
        %v1330 = vld.sshfl [vmem:[#allocation1 + $0x20] sm:$0xff pattern:$0x73625140]
        %1331 = vst [vmem:[#allocation1] ss:$4 sm:$0xff] %v972
        %1332 = vst [vmem:[%s1285] ss:$4 sm:$0xff] %v973
        %1333 = vst [vmem:[%s1287] ss:$4 sm:$0xff] %v974
        %1334 = vst [vmem:[%s1289] ss:$4 sm:$0xff] %v975
        %1335 = vst [vmem:[%s1291] ss:$4 sm:$0xff] %v976
        %1336 = vst [vmem:[%s1293] ss:$4 sm:$0xff] %v977
        %1337 = vst [vmem:[%s1295] ss:$4 sm:$0xff] %v978
        %1338 = vst [vmem:[%s1297] ss:$4 sm:$0xff] %v979
        %v1339 = vld.sshfl [vmem:[#allocation1] sm:$0xff pattern:$0x73625140]
        %v1340 = vld.sshfl [vmem:[#allocation1 + $0x20] sm:$0xff pattern:$0x73625140]
        %1341 = vst [vmem:[#allocation1] ss:$4 sm:$0xff] %v1108
        %1342 = vst [vmem:[%s1285] ss:$4 sm:$0xff] %v1109
        %1343 = vst [vmem:[%s1287] ss:$4 sm:$0xff] %v1110
        %1344 = vst [vmem:[%s1289] ss:$4 sm:$0xff] %v1111
        %1345 = vst [vmem:[%s1291] ss:$4 sm:$0xff] %v1112
        %1346 = vst [vmem:[%s1293] ss:$4 sm:$0xff] %v1113
        %1347 = vst [vmem:[%s1295] ss:$4 sm:$0xff] %v1114
        %1348 = vst [vmem:[%s1297] ss:$4 sm:$0xff] %v1115
        %v1349 = vld.sshfl [vmem:[#allocation1] sm:$0xff pattern:$0x73625140]
        %v1350 = vld.sshfl [vmem:[#allocation1 + $0x20] sm:$0xff pattern:$0x73625140]
        %1351 = vst [vmem:[#allocation1] ss:$4 sm:$0xff] %v980
        %1352 = vst [vmem:[%s1285] ss:$4 sm:$0xff] %v981
        %1353 = vst [vmem:[%s1287] ss:$4 sm:$0xff] %v982
        %1354 = vst [vmem:[%s1289] ss:$4 sm:$0xff] %v983
        %1355 = vst [vmem:[%s1291] ss:$4 sm:$0xff] %v984
        %1356 = vst [vmem:[%s1293] ss:$4 sm:$0xff] %v985
        %1357 = vst [vmem:[%s1295] ss:$4 sm:$0xff] %v986
        %1358 = vst [vmem:[%s1297] ss:$4 sm:$0xff] %v987
        %v1359 = vld.sshfl [vmem:[#allocation1] sm:$0xff pattern:$0x73625140]
        %v1360 = vld.sshfl [vmem:[#allocation1 + $0x20] sm:$0xff pattern:$0x73625140]
        %1361 = vst [vmem:[#allocation1] ss:$4 sm:$0xff] %v1116
        %1362 = vst [vmem:[%s1285] ss:$4 sm:$0xff] %v1117
        %1363 = vst [vmem:[%s1287] ss:$4 sm:$0xff] %v1118
        %1364 = vst [vmem:[%s1289] ss:$4 sm:$0xff] %v1119
        %1365 = vst [vmem:[%s1291] ss:$4 sm:$0xff] %v1120
        %1366 = vst [vmem:[%s1293] ss:$4 sm:$0xff] %v1121
        %1367 = vst [vmem:[%s1295] ss:$4 sm:$0xff] %v1122
        %1368 = vst [vmem:[%s1297] ss:$4 sm:$0xff] %v1123
        %v1369 = vld.sshfl [vmem:[#allocation1] sm:$0xff pattern:$0x73625140]
        %v1370 = vld.sshfl [vmem:[#allocation1 + $0x20] sm:$0xff pattern:$0x73625140]
        %1371 = vst [vmem:[#allocation1] ss:$4 sm:$0xff] %v988
        %1372 = vst [vmem:[%s1285] ss:$4 sm:$0xff] %v989
        %1373 = vst [vmem:[%s1287] ss:$4 sm:$0xff] %v990
        %1374 = vst [vmem:[%s1289] ss:$4 sm:$0xff] %v991
        %1375 = vst [vmem:[%s1291] ss:$4 sm:$0xff] %v992
        %1376 = vst [vmem:[%s1293] ss:$4 sm:$0xff] %v993
        %1377 = vst [vmem:[%s1295] ss:$4 sm:$0xff] %v994
        %1378 = vst [vmem:[%s1297] ss:$4 sm:$0xff] %v995
        %v1379 = vld.sshfl [vmem:[#allocation1] sm:$0xff pattern:$0x73625140]
        %v1380 = vld.sshfl [vmem:[#allocation1 + $0x20] sm:$0xff pattern:$0x73625140]
        %1381 = vst [vmem:[#allocation1] ss:$4 sm:$0xff] %v1124
        %1382 = vst [vmem:[%s1285] ss:$4 sm:$0xff] %v1125
        %1383 = vst [vmem:[%s1287] ss:$4 sm:$0xff] %v1126
        %1384 = vst [vmem:[%s1289] ss:$4 sm:$0xff] %v1127
        %1385 = vst [vmem:[%s1291] ss:$4 sm:$0xff] %v1128
        %1386 = vst [vmem:[%s1293] ss:$4 sm:$0xff] %v1129
        %1387 = vst [vmem:[%s1295] ss:$4 sm:$0xff] %v1130
        %1388 = vst [vmem:[%s1297] ss:$4 sm:$0xff] %v1131
        %v1389 = vld.sshfl [vmem:[#allocation1] sm:$0xff pattern:$0x73625140]
        %v1390 = vld.sshfl [vmem:[#allocation1 + $0x20] sm:$0xff pattern:$0x73625140]
        %1391 = vst [vmem:[#allocation1] ss:$4 sm:$0xff] %v996
        %1392 = vst [vmem:[%s1285] ss:$4 sm:$0xff] %v997
        %1393 = vst [vmem:[%s1287] ss:$4 sm:$0xff] %v998
        %1394 = vst [vmem:[%s1289] ss:$4 sm:$0xff] %v999
        %1395 = vst [vmem:[%s1291] ss:$4 sm:$0xff] %v1000
        %1396 = vst [vmem:[%s1293] ss:$4 sm:$0xff] %v1001
        %1397 = vst [vmem:[%s1295] ss:$4 sm:$0xff] %v1002
        %1398 = vst [vmem:[%s1297] ss:$4 sm:$0xff] %v1003
        %v1399 = vld.sshfl [vmem:[#allocation1] sm:$0xff pattern:$0x73625140]
        %v1400 = vld.sshfl [vmem:[#allocation1 + $0x20] sm:$0xff pattern:$0x73625140]
        %1401 = vst [vmem:[#allocation1] ss:$4 sm:$0xff] %v1132
        %1402 = vst [vmem:[%s1285] ss:$4 sm:$0xff] %v1133
        %1403 = vst [vmem:[%s1287] ss:$4 sm:$0xff] %v1134
        %1404 = vst [vmem:[%s1289] ss:$4 sm:$0xff] %v1135
        %1405 = vst [vmem:[%s1291] ss:$4 sm:$0xff] %v1136
        %1406 = vst [vmem:[%s1293] ss:$4 sm:$0xff] %v1137
        %1407 = vst [vmem:[%s1295] ss:$4 sm:$0xff] %v1138
        %1408 = vst [vmem:[%s1297] ss:$4 sm:$0xff] %v1139
        %v1409 = vld.sshfl [vmem:[#allocation1] sm:$0xff pattern:$0x73625140]
        %v1410 = vld.sshfl [vmem:[#allocation1 + $0x20] sm:$0xff pattern:$0x73625140]
        %1411 = vst [vmem:[#allocation1] ss:$4 sm:$0xff] %v1004
        %1412 = vst [vmem:[%s1285] ss:$4 sm:$0xff] %v1005
        %1413 = vst [vmem:[%s1287] ss:$4 sm:$0xff] %v1006
        %1414 = vst [vmem:[%s1289] ss:$4 sm:$0xff] %v1007
        %1415 = vst [vmem:[%s1291] ss:$4 sm:$0xff] %v1008
        %1416 = vst [vmem:[%s1293] ss:$4 sm:$0xff] %v1009
        %1417 = vst [vmem:[%s1295] ss:$4 sm:$0xff] %v1010
        %1418 = vst [vmem:[%s1297] ss:$4 sm:$0xff] %v1011
        %v1419 = vld.sshfl [vmem:[#allocation1] sm:$0xff pattern:$0x73625140]
        %v1420 = vld.sshfl [vmem:[#allocation1 + $0x20] sm:$0xff pattern:$0x73625140]
        %1421 = vst [vmem:[#allocation1] ss:$4 sm:$0xff] %v1140
        %1422 = vst [vmem:[%s1285] ss:$4 sm:$0xff] %v1141
        %1423 = vst [vmem:[%s1287] ss:$4 sm:$0xff] %v1142
        %1424 = vst [vmem:[%s1289] ss:$4 sm:$0xff] %v1143
        %1425 = vst [vmem:[%s1291] ss:$4 sm:$0xff] %v1144
        %1426 = vst [vmem:[%s1293] ss:$4 sm:$0xff] %v1145
        %1427 = vst [vmem:[%s1295] ss:$4 sm:$0xff] %v1146
        %1428 = vst [vmem:[%s1297] ss:$4 sm:$0xff] %v1147
        %v1429 = vld.sshfl [vmem:[#allocation1] sm:$0xff pattern:$0x73625140]
        %v1430 = vld.sshfl [vmem:[#allocation1 + $0x20] sm:$0xff pattern:$0x73625140]
        %1431 = vst [vmem:[#allocation1] ss:$4 sm:$0xff] %v1012
        %1432 = vst [vmem:[%s1285] ss:$4 sm:$0xff] %v1013
        %1433 = vst [vmem:[%s1287] ss:$4 sm:$0xff] %v1014
        %1434 = vst [vmem:[%s1289] ss:$4 sm:$0xff] %v1015
        %1435 = vst [vmem:[%s1291] ss:$4 sm:$0xff] %v1016
        %1436 = vst [vmem:[%s1293] ss:$4 sm:$0xff] %v1017
        %1437 = vst [vmem:[%s1295] ss:$4 sm:$0xff] %v1018
        %1438 = vst [vmem:[%s1297] ss:$4 sm:$0xff] %v1019
        %v1439 = vld.sshfl [vmem:[#allocation1] sm:$0xff pattern:$0x73625140]
        %v1440 = vld.sshfl [vmem:[#allocation1 + $0x20] sm:$0xff pattern:$0x73625140]
        %1441 = vst [vmem:[#allocation1] ss:$4 sm:$0xff] %v1148
        %1442 = vst [vmem:[%s1285] ss:$4 sm:$0xff] %v1149
        %1443 = vst [vmem:[%s1287] ss:$4 sm:$0xff] %v1150
        %1444 = vst [vmem:[%s1289] ss:$4 sm:$0xff] %v1151
        %1445 = vst [vmem:[%s1291] ss:$4 sm:$0xff] %v1152
        %1446 = vst [vmem:[%s1293] ss:$4 sm:$0xff] %v1153
        %1447 = vst [vmem:[%s1295] ss:$4 sm:$0xff] %v1154
        %1448 = vst [vmem:[%s1297] ss:$4 sm:$0xff] %v1155
        %v1449 = vld.sshfl [vmem:[#allocation1] sm:$0xff pattern:$0x73625140]
        %v1450 = vld.sshfl [vmem:[#allocation1 + $0x20] sm:$0xff pattern:$0x73625140]
        %1483 = vst.msk [vmem:[%s207] sm:$0xff] %vm232, %v1299
        %1484 = vst.msk [vmem:[%s207 + $0x8] sm:$0xff] %vm232, %v1300
        %1485 = vst.msk [vmem:[%s207 + $0x10] sm:$0xff] %vm232, %v1309
        %1486 = vst.msk [vmem:[%s207 + $0x18] sm:$0xff] %vm232, %v1310
        %1487 = vst.msk [vmem:[%s207 + $0x20] sm:$0xff] %vm232, %v1319
        %1488 = vst.msk [vmem:[%s207 + $0x28] sm:$0xff] %vm232, %v1320
        %1489 = vst.msk [vmem:[%s207 + $0x30] sm:$0xff] %vm232, %v1329
        %1490 = vst.msk [vmem:[%s207 + $0x38] sm:$0xff] %vm232, %v1330
        %1491 = vst.msk [vmem:[%s207 + $0x40] sm:$0xff] %vm232, %v1339
        %1492 = vst.msk [vmem:[%s207 + $0x48] sm:$0xff] %vm232, %v1340
        %1493 = vst.msk [vmem:[%s207 + $0x50] sm:$0xff] %vm232, %v1349
        %1494 = vst.msk [vmem:[%s207 + $0x58] sm:$0xff] %vm232, %v1350
        %1495 = vst.msk [vmem:[%s207 + $0x60] sm:$0xff] %vm232, %v1359
        %1496 = vst.msk [vmem:[%s207 + $0x68] sm:$0xff] %vm232, %v1360
        %1497 = vst.msk [vmem:[%s207 + $0x70] sm:$0xff] %vm232, %v1369
        %1498 = vst.msk [vmem:[%s207 + $0x78] sm:$0xff] %vm232, %v1370
        %1499 = vst.msk [vmem:[%s207 + $0x80] sm:$0xff] %vm232, %v1379
        %1500 = vst.msk [vmem:[%s207 + $0x88] sm:$0xff] %vm232, %v1380
        %1501 = vst.msk [vmem:[%s207 + $0x90] sm:$0xff] %vm232, %v1389
        %1502 = vst.msk [vmem:[%s207 + $0x98] sm:$0xff] %vm232, %v1390
        %1503 = vst.msk [vmem:[%s207 + $0xa0] sm:$0xff] %vm232, %v1399
        %1504 = vst.msk [vmem:[%s207 + $0xa8] sm:$0xff] %vm232, %v1400
        %1505 = vst.msk [vmem:[%s207 + $0xb0] sm:$0xff] %vm232, %v1409
        %1506 = vst.msk [vmem:[%s207 + $0xb8] sm:$0xff] %vm232, %v1410
        %1507 = vst.msk [vmem:[%s207 + $0xc0] sm:$0xff] %vm232, %v1419
        %1508 = vst.msk [vmem:[%s207 + $0xc8] sm:$0xff] %vm232, %v1420
        %1509 = vst.msk [vmem:[%s207 + $0xd0] sm:$0xff] %vm232, %v1429
        %1510 = vst.msk [vmem:[%s207 + $0xd8] sm:$0xff] %vm232, %v1430
        %1511 = vst.msk [vmem:[%s207 + $0xe0] sm:$0xff] %vm232, %v1439
        %1512 = vst.msk [vmem:[%s207 + $0xe8] sm:$0xff] %vm232, %v1440
        %1513 = vst.msk [vmem:[%s207 + $0xf0] sm:$0xff] %vm232, %v1449
        %1514 = vst.msk [vmem:[%s207 + $0xf8] sm:$0xff] %vm232, %v1450
        %s1515 = sand.u32 %s97, 1
        %s1516 = scalar_lea.sflag [#allocation4], %s1515
        %s1517 = sand.u32 %s97, 1
        %s1518 = smul.addr %s1517, 256
        %s1519 = scalar_lea.vmem [#allocation7], %s1518
        // Predicated region
        $region41: #{tpu_custom_call.1} parent=31 // pred_check
          %p1520 = pneg %p107
        $region42: #{tpu_custom_call.1} parent=31 // pred_check_branch
          %1522 = sbr.rel (%p1520) target = $region44
        $region43: #{tpu_custom_call.1} parent=31 // pred_region
          %1524 = vsyncadd %s1516, 0
          %s1525 = smul.addr %s21, 32
          %s1526 = smul.addr %s1525, 8
          %s1527 = scalar_lea.hbm %s3, %s1526
          %s1528 = sshll.u32 %s1519, 4
          %s1529 = int_to_ptr.vmem [resolvable:$true] %s1528
          %s1530 = sshll.u32 %s1527, 4
          %s1531 = int_to_ptr.hbm [resolvable:$true] %s1530
          %1536 = dma.vmem_to_hbm [thread:$0]  %s1529, 4096, %s1531, %s1516, 128, 128, 8
        $region44: #{tpu_custom_call.1} parent=31 // pred_fallthru
          _
      $region32: #{tpu_custom_call.1} parent=5 // pred_fallthru
        _
      %p1537 = scmp.le.s32.totalorder 2, %s16
      // Predicated region
      $region45: #{tpu_custom_call.1} parent=5 // pred_check
        %p1538 = pneg %p1537
      $region46: #{tpu_custom_call.1} parent=5 // pred_check_branch
        %1540 = sbr.rel (%p1538) target = $region48
      $region47: #{tpu_custom_call.1} parent=5 // pred_region
        %s1541 = ssub.s32 %s16, 2
        // Predicated region
        $region49: #{tpu_custom_call.1} parent=47 // pred_check
          %p1542 = pneg %p113
        $region50: #{tpu_custom_call.1} parent=47 // pred_check_branch
          %1544 = sbr.rel (%p1542) target = $region52
        $region51: #{tpu_custom_call.1} parent=47 // pred_region
          %s1545 = sand.u32 %s98, 1
          %s1546 = scalar_lea.sflag [#allocation4], %s1545
          %s1547 = sand.u32 %s98, 1
          %s1548 = smul.addr %s1547, 256
          %s1549 = scalar_lea.vmem [#allocation7], %s1548
          %1551 = dma.done %s1546, 4096
        $region52: #{tpu_custom_call.1} parent=47 // pred_fallthru
          _
      $region48: #{tpu_custom_call.1} parent=5 // pred_fallthru
        _
    $region6: #{tpu_custom_call.1} parent=1 // loop_footer
      %s20 = sadd.s32 1, %s16
    $region7: #{tpu_custom_call.1} parent=1 // loop_footer_branch
      %15 = sbr.rel target = $region3
    $region8: #{tpu_custom_call.1} parent=1 // loop_exit
      _
    %1552 = vsyncpa [#allocation3], 1
    %s1553 = scalar_lea.sflag [#allocation3], 1
    %1554 = vsyncpa %s1553, 1
    %1555 = vsyncpa [#allocation6], 1
    %1556 = vsyncpa [#allocation4], 1
    %s1557 = scalar_lea.sflag [#allocation4], 1
    %1558 = vsyncpa %s1557, 1

</llo_original>
